<compile_context>
chip_gen: v7x
topology: tpu7x:2x2x1
jax: 0.10.0
libtpu: 0.0.40
codegen_flags: <defaults>
</compile_context>

<pallas_src>
import functools

import jax
import jax.numpy as jnp
from jax.experimental import pallas as pl
from jax.experimental.pallas import tpu as pltpu


def _round_up(x, m):
    return ((x + m - 1) // m) * m


def attention2_kernel(x_ref, w1_ref, b1_ref, w2_ref, b2_ref, out_ref, *,
                      K, matmul_dtype):
    """One (tm, L) tile of instances -> (tm, K) attention logits.

    x_ref : (tm, L)  matmul_dtype (bf16 streamed from HBM by default)
    w1_ref: (L, D)   matmul_dtype, VMEM-resident across grid steps
    b1_ref: (1, D)   f32, resident
    w2_ref: (1, D)   f32 when K == 1 (VPU path), else (D, K) matmul_dtype
    b2_ref: (1, K)   f32, resident
    out_ref:(tm, K)  f32, streamed (one tile per grid step, no residency)
    """
    # Hidden layer: MXU matmul with f32 accumulation, f32 bias, EUP tanh.
    h = jnp.dot(x_ref[...], w1_ref[...], preferred_element_type=jnp.float32)
    h = jnp.tanh(h + b1_ref[...])

    # Output projection -> (tm, K) logits.
    if K == 1:
        # K == 1: a (D, 1) MXU pass would light a single output lane; VPU
        # multiply + lane reduction against the resident (1, D) row instead.
        s = jnp.sum(h * w2_ref[...], axis=1, keepdims=True)
    else:
        s = jnp.dot(h.astype(matmul_dtype), w2_ref[...],
                    preferred_element_type=jnp.float32)

    # Unnormalized logits (b2 included so isNorm=False matches PyTorch
    # exactly; under softmax it cancels anyway).  Softmax is finalized in the
    # wrapper over the (K, N) vector (negligible vs. the x traffic).
    out_ref[...] = s + b2_ref[...]


def attention2_forward(x, w1, b1, w2, b2, isNorm=True, *, block_rows=None,
                       matmul_dtype=jnp.bfloat16, x_buffer_count=2):
    """Forward pass of Attention2.

    x : (N, L)            bag of N instances with L features
    w1: (D, L), b1: (D,)  first Linear (PyTorch layout: (out, in))
    w2: (K, D), b2: (K,)  second Linear
    Returns (K, N) f32, softmax-normalized over N when isNorm=True.
    """
    N, L = x.shape
    D, L2 = w1.shape
    K, D2 = w2.shape
    assert L2 == L and D2 == D and b1.shape == (D,) and b2.shape == (K,)

    itemsize = jnp.dtype(matmul_dtype).itemsize
    pack = 8 * (4 // itemsize)          # sublane packing: 8 for f32, 16 for bf16

    # Row tile: target ~2048 rows per step (amortizes ~0.35 us/step overhead),
    # balanced across tiles so padding stays bounded; pack-aligned.
    if block_rows is None:
        target = 2048
        n_tiles = max(1, -(-N // target))
        tm = _round_up(-(-N // n_tiles), pack)
    else:
        tm = _round_up(max(block_rows, pack), pack)
    tm = min(tm, _round_up(N, pack))
    n_pad = _round_up(N, tm)
    grid = (n_pad // tm,)

    # Cast x in HBM (halves streamed bytes) and pad rows to a tile multiple.
    if x.dtype != matmul_dtype:
        x = x.astype(matmul_dtype)
    if n_pad != N:
        x = jnp.pad(x, ((0, n_pad - N), (0, 0)))

    # One-time layout/dtype prep so the kernel does plain row-major work.
    w1k = w1.T.astype(matmul_dtype)                 # (L, D), VMEM resident
    b1k = b1.reshape(1, D).astype(jnp.float32)
    if K == 1:
        w2k = w2.reshape(1, D).astype(jnp.float32)  # VPU path stays f32
    else:
        w2k = w2.T.astype(matmul_dtype)             # (D, K)
    b2k = b2.reshape(1, K).astype(jnp.float32)

    # Optional deeper buffering on the x stream if DMA bubbles show up.
    x_spec_kwargs = {}
    if x_buffer_count is not None and x_buffer_count > 2:
        x_spec_kwargs["pipeline_mode"] = pl.Buffered(x_buffer_count)
    x_spec = pl.BlockSpec((tm, L), lambda i: (i, 0), **x_spec_kwargs)

    cost = pl.CostEstimate(
        flops=2 * n_pad * L * D + 2 * n_pad * D * K,
        transcendentals=n_pad * D,
        bytes_accessed=(n_pad * L * itemsize + L * D * itemsize
                        + 4 * (D + K + D * K) + 4 * n_pad * K),
    )

    logits = pl.pallas_call(
        functools.partial(attention2_kernel, K=K, matmul_dtype=matmul_dtype),
        out_shape=jax.ShapeDtypeStruct((n_pad, K), jnp.float32),
        grid=grid,
        in_specs=[
            x_spec,                                      # x streamed by N-tile
            pl.BlockSpec((L, D), lambda i: (0, 0)),      # weights stay resident
            pl.BlockSpec((1, D), lambda i: (0, 0)),
            pl.BlockSpec(w2k.shape, lambda i: (0, 0)),
            pl.BlockSpec((1, K), lambda i: (0, 0)),
        ],
        # Streamed output (no resident accumulator): VMEM independent of N.
        out_specs=pl.BlockSpec((tm, K), lambda i: (i, 0)),
        compiler_params=pltpu.CompilerParams(
            # No cross-tile state left in the kernel -> fully parallel grid;
            # v7x shards the N tiles across both TensorCores.
            dimension_semantics=("parallel",),
            vmem_limit_bytes=32 * 1024 * 1024,
        ),
        cost_estimate=cost,
    )(x, w1k, b1k, w2k, b2k)

    logits = logits[:N]                                  # drop padded rows
    # Lane-dense (K, N) result: free reshape for K == 1, tiny XLA transpose
    # otherwise (K*N*4 bytes, negligible vs. the kernel's x traffic).
    a = logits.reshape(1, N) if K == 1 else logits.T
    if isNorm:
        # Softmax finalize over N in the wrapper (review option 3b); exact f32.
        a = jax.nn.softmax(a, axis=1)
    return a


def _reference(x, w1, b1, w2, b2, isNorm):
    hp = jax.lax.Precision.HIGHEST
    a = jnp.tanh(jnp.dot(x, w1.T, precision=hp) + b1)
    a = jnp.dot(a, w2.T, precision=hp) + b2
    a = a.T
    if isNorm:
        a = jax.nn.softmax(a, axis=1)
    return a


def _make_params(key, L, D, K):
    kw1, kb1, kw2, kb2 = jax.random.split(key, 4)
    bound1 = 1.0 / (L ** 0.5)
    w1 = jax.random.uniform(kw1, (D, L), jnp.float32, -bound1, bound1)
    b1 = jax.random.uniform(kb1, (D,), jnp.float32, -bound1, bound1)
    bound2 = 1.0 / (D ** 0.5)
    w2 = jax.random.uniform(kw2, (K, D), jnp.float32, -bound2, bound2)
    b2 = jax.random.uniform(kb2, (K,), jnp.float32, -bound2, bound2)
    return w1, b1, w2, b2


if __name__ == "__main__":
    L, D = 512, 128
    key = jax.random.PRNGKey(0)
    kx1, kx2, kx3, kp1, kp2 = jax.random.split(key, 5)

    # --- Case 1: module defaults (K=1), small bag, single tile -------------
    K = 1
    N = 20
    w1, b1, w2, b2 = _make_params(kp1, L, D, K)
    x = jax.random.normal(kx1, (N, L), dtype=jnp.float32)

    out_norm = jax.block_until_ready(
        attention2_forward(x, w1, b1, w2, b2, isNorm=True))
    out_raw = jax.block_until_ready(
        attention2_forward(x, w1, b1, w2, b2, isNorm=False))

    assert out_norm.shape == (K, N) and out_raw.shape == (K, N)
    assert jnp.allclose(out_norm, _reference(x, w1, b1, w2, b2, True),
                        rtol=2e-2, atol=2e-3)
    assert jnp.allclose(out_raw, _reference(x, w1, b1, w2, b2, False),
                        rtol=2e-2, atol=1e-2)
    assert jnp.allclose(jnp.sum(out_norm, axis=1), 1.0, atol=1e-3)

    # --- Case 2: K=1, multi-tile grid with row padding in the last tile ----
    N2 = 300
    x2 = jax.random.normal(kx2, (N2, L), dtype=jnp.float32)
    out2 = jax.block_until_ready(
        attention2_forward(x2, w1, b1, w2, b2, isNorm=True, block_rows=128))
    assert out2.shape == (K, N2)
    assert jnp.allclose(out2, _reference(x2, w1, b1, w2, b2, True),
                        rtol=2e-2, atol=2e-3)
    assert jnp.allclose(jnp.sum(out2, axis=1), 1.0, atol=1e-3)

    # --- Case 3: K>1 exercises the MXU second-projection branch ------------
    K3, N3 = 3, 64
    w1c, b1c, w2c, b2c = _make_params(kp2, L, D, K3)
    x3 = jax.random.normal(kx3, (N3, L), dtype=jnp.float32)
    out3 = jax.block_until_ready(
        attention2_forward(x3, w1c, b1c, w2c, b2c, isNorm=True))
    assert out3.shape == (K3, N3)
    assert jnp.allclose(out3, _reference(x3, w1c, b1c, w2c, b2c, True),
                        rtol=2e-2, atol=3e-3)

    print("KERNEL_OK")
</pallas_src>

<mosaic_0001>
module attributes {stable_mosaic.version = 11 : i64} {
  func.func @attention2_kernel(%arg0: i32, %arg1: memref<32x512xbf16, #tpu.memory_space<vmem>>, %arg2: memref<512x128xbf16, #tpu.memory_space<vmem>>, %arg3: memref<1x128xf32, #tpu.memory_space<vmem>>, %arg4: memref<1x128xf32, #tpu.memory_space<vmem>>, %arg5: memref<1x1xf32, #tpu.memory_space<vmem>>, %arg6: memref<32x1xf32, #tpu.memory_space<vmem>>) attributes {dimension_semantics = [#tpu.dimension_semantics<parallel>], iteration_bounds = array<i64: 1>, scalar_prefetch = 0 : i64, scratch_operands = 0 : i64, tpu.core_type = #tpu.core_type<tc>, window_params = [{transform_indices = @transform_0, window_bounds = array<i64: 32, 512>}, {pipeline_mode = #tpu.pipeline_mode<synchronous>, transform_indices = @transform_1, window_bounds = array<i64: 512, 128>}, {pipeline_mode = #tpu.pipeline_mode<synchronous>, transform_indices = @transform_2, window_bounds = array<i64: 1, 128>}, {pipeline_mode = #tpu.pipeline_mode<synchronous>, transform_indices = @transform_3, window_bounds = array<i64: 1, 128>}, {pipeline_mode = #tpu.pipeline_mode<synchronous>, transform_indices = @transform_4, window_bounds = array<i64: 1, 1>}, {transform_indices = @transform_5, window_bounds = array<i64: 32, 1>}]} {
    %c0 = arith.constant 0 : index
    %c0_0 = arith.constant 0 : index
    %0 = vector.load %arg1[%c0, %c0_0] : memref<32x512xbf16, #tpu.memory_space<vmem>>, vector<32x512xbf16>
    %c0_1 = arith.constant 0 : index
    %c0_2 = arith.constant 0 : index
    %1 = vector.load %arg2[%c0_1, %c0_2] : memref<512x128xbf16, #tpu.memory_space<vmem>>, vector<512x128xbf16>
    %cst = arith.constant dense<0.000000e+00> : vector<32x128xf32>
    %2 = tpu.matmul %0, %1, %cst {dimension_numbers = #tpu.dot_dimension_numbers<[1], [0], [0], [1], [0, 0, 1, 1], [], []>} : vector<32x512xbf16>, vector<512x128xbf16>, vector<32x128xf32> -> vector<32x128xf32>
    %c0_3 = arith.constant 0 : index
    %c0_4 = arith.constant 0 : index
    %3 = vector.load %arg3[%c0_3, %c0_4] : memref<1x128xf32, #tpu.memory_space<vmem>>, vector<1x128xf32>
    %4 = vector.broadcast %3 : vector<1x128xf32> to vector<32x128xf32>
    %5 = arith.addf %2, %4 : vector<32x128xf32>
    %6 = math.tanh %5 : vector<32x128xf32>
    %c0_5 = arith.constant 0 : index
    %c0_6 = arith.constant 0 : index
    %7 = vector.load %arg4[%c0_5, %c0_6] : memref<1x128xf32, #tpu.memory_space<vmem>>, vector<1x128xf32>
    %8 = vector.broadcast %7 : vector<1x128xf32> to vector<32x128xf32>
    %9 = arith.mulf %6, %8 : vector<32x128xf32>
    %cst_7 = arith.constant dense<0.000000e+00> : vector<32xf32>
    %10 = vector.multi_reduction <add>, %9, %cst_7 [1] : vector<32x128xf32> to vector<32xf32>
    %11 = vector.shape_cast %10 : vector<32xf32> to vector<32x1xf32>
    %c0_8 = arith.constant 0 : index
    %c0_9 = arith.constant 0 : index
    %12 = vector.load %arg5[%c0_8, %c0_9] : memref<1x1xf32, #tpu.memory_space<vmem>>, vector<1x1xf32>
    %13 = vector.broadcast %12 : vector<1x1xf32> to vector<32x1xf32>
    %14 = arith.addf %11, %13 : vector<32x1xf32>
    %c0_10 = arith.constant 0 : index
    %c0_11 = arith.constant 0 : index
    %15 = vector.load %arg6[%c0_10, %c0_11] : memref<32x1xf32, #tpu.memory_space<vmem>>, vector<32x1xf32>
    tpu.vector_store %arg6[%c0_10, %c0_11], %14 {strides = array<i32>} : memref<32x1xf32, #tpu.memory_space<vmem>>, vector<32x1xf32>,
    return
  }
  func.func @transform_0(%arg0: i32) -> (i32, i32) {
    %c0_i32 = arith.constant 0 : i32
    %c0_i32_0 = arith.constant 0 : i32
    return %arg0, %c0_i32 : i32, i32
  }
  func.func @transform_1(%arg0: i32) -> (i32, i32) {
    %c0_i32 = arith.constant 0 : i32
    %c0_i32_0 = arith.constant 0 : i32
    %c0_i32_1 = arith.constant 0 : i32
    return %c0_i32, %c0_i32_0 : i32, i32
  }
  func.func @transform_2(%arg0: i32) -> (i32, i32) {
    %c0_i32 = arith.constant 0 : i32
    %c0_i32_0 = arith.constant 0 : i32
    %c0_i32_1 = arith.constant 0 : i32
    return %c0_i32, %c0_i32_0 : i32, i32
  }
  func.func @transform_3(%arg0: i32) -> (i32, i32) {
    %c0_i32 = arith.constant 0 : i32
    %c0_i32_0 = arith.constant 0 : i32
    %c0_i32_1 = arith.constant 0 : i32
    return %c0_i32, %c0_i32_0 : i32, i32
  }
  func.func @transform_4(%arg0: i32) -> (i32, i32) {
    %c0_i32 = arith.constant 0 : i32
    %c0_i32_0 = arith.constant 0 : i32
    %c0_i32_1 = arith.constant 0 : i32
    return %c0_i32, %c0_i32_0 : i32, i32
  }
  func.func @transform_5(%arg0: i32) -> (i32, i32) {
    %c0_i32 = arith.constant 0 : i32
    %c0_i32_0 = arith.constant 0 : i32
    return %arg0, %c0_i32 : i32, i32
  }
}

</mosaic_0001>

<llo_original>
// kernel: tpu_custom_call.1
$region0: #{tpu_custom_call.1}
  #allocation0 [shape = 'u32[]', space=smem, size = 0x4, offset = 0x4, fixed_abs, tag = 'smem constant byte address 0x4 - core index']
  #allocation1 [shape = 'u32[144,128]{1,0:T(1,128)}', space=vmem, size = 0x12000, scoped, tag = 'internal scratch']
  #allocation2 [shape = 'f32[1,1]{1,0:T(1,128)S(1)}', space=vmem, size = 0x200, scoped, tag = 'scoped memory for tpu_custom_call.1']
  %s0 = inlined_call_operand.hbm [shape: bf16[32,512], index: 0, kind: input, shape index: {}]
  %s1 = inlined_call_operand.hbm [shape: bf16[512,128], index: 1, kind: input, shape index: {}]
  %s2 = inlined_call_operand.vmem [shape: f32[1,128], index: 2, kind: input, shape index: {}]
  %s3 = inlined_call_operand.vmem [shape: f32[1,128], index: 3, kind: input, shape index: {}]
  %s4 = inlined_call_operand.<no memory space> [shape: f32[1,1], index: 4, kind: input, shape index: {}]
  %s5 = inlined_call_operand.vmem [shape: f32[32,1], index: 5, kind: output, shape index: {}]
  %s6 = sld [smem:[#allocation0]]
  $region38: #{tpu_custom_call.1} parent=0
    _
  %s8 = ssub.s32 1, %s6
  %s9 = scalar_select 0, %s8, %s6
  %v10 = vstv %s4
  %11 = vst [vmem:[#allocation2] sm:$0x1] %v10
  $region1: #{tpu_custom_call.1} parent=0
    #allocation3 [shape = 'u8[32768]{0}', space=vmem, size = 0x8000, scoped, tag = 'input window, operand 0, single buffered']
    #allocation4 [shape = 's32[1]{0}', space=sflag, size = 0x4, scoped, tag = 'scoped memory for tpu_custom_call.1']
    #allocation5 [shape = 'u8[131072]{0}', space=vmem, size = 0x20000, scoped, tag = 'input window, operand 1, single buffered']
    #allocation6 [shape = 's32[1]{0}', space=sflag, size = 0x4, scoped, tag = 'scoped memory for tpu_custom_call.1']
    %12 = vsyncpa [#allocation4], 0
    %13 = vsyncpa [#allocation6], 0
    // Predicated region
    $region2: #{tpu_custom_call.1} parent=1 // pred_check
      _
    $region3: #{tpu_custom_call.1} parent=1 // pred_check_branch
      %15 = sbr.rel (0) target = $region5
    $region4: #{tpu_custom_call.1} parent=1 // pred_region
      %s17 = ssub.s32 1024, 1024
      %18 = vsyncadd [#allocation4], %s17
      %s19 = sshll.u32 [#allocation3], 4
      %s20 = int_to_ptr.vmem [resolvable:$true] %s19
      %25 = dma.hbm_to_vmem [thread:$0]  %s0, 1024, %s20, [#allocation4], 256, 256, 16
    $region5: #{tpu_custom_call.1} parent=1 // pred_fallthru
      _
    // Predicated region
    $region6: #{tpu_custom_call.1} parent=1 // pred_check
      _
    $region7: #{tpu_custom_call.1} parent=1 // pred_check_branch
      %27 = sbr.rel (0) target = $region9
    $region8: #{tpu_custom_call.1} parent=1 // pred_region
      %s29 = ssub.s32 4096, 4096
      %30 = vsyncadd [#allocation6], %s29
      %s31 = sshll.u32 [#allocation5], 4
      %s32 = int_to_ptr.vmem [resolvable:$true] %s31
      %37 = dma.hbm_to_vmem [thread:$0]  %s1, 4096, %s32, [#allocation6], 64, 64, 4
    $region9: #{tpu_custom_call.1} parent=1 // pred_fallthru
      _
    // Predicated region
    $region10: #{tpu_custom_call.1} parent=1 // pred_check
      _
    $region11: #{tpu_custom_call.1} parent=1 // pred_check_branch
      %39 = sbr.rel (0) target = $region13
    $region12: #{tpu_custom_call.1} parent=1 // pred_region
      _
    $region13: #{tpu_custom_call.1} parent=1 // pred_fallthru
      _
    // Predicated region
    $region14: #{tpu_custom_call.1} parent=1 // pred_check
      _
    $region15: #{tpu_custom_call.1} parent=1 // pred_check_branch
      %41 = sbr.rel (0) target = $region17
    $region16: #{tpu_custom_call.1} parent=1 // pred_region
      _
    $region17: #{tpu_custom_call.1} parent=1 // pred_fallthru
      _
    // Predicated region
    $region18: #{tpu_custom_call.1} parent=1 // pred_check
      _
    $region19: #{tpu_custom_call.1} parent=1 // pred_check_branch
      %43 = sbr.rel (0) target = $region21
    $region20: #{tpu_custom_call.1} parent=1 // pred_region
      _
    $region21: #{tpu_custom_call.1} parent=1 // pred_fallthru
      _
    // Predicated region
    $region22: #{tpu_custom_call.1} parent=1 // pred_check
      _
    $region23: #{tpu_custom_call.1} parent=1 // pred_check_branch
      %45 = sbr.rel (0) target = $region25
    $region24: #{tpu_custom_call.1} parent=1 // pred_region
      %46 = dma.done [#allocation4], 1024
    $region25: #{tpu_custom_call.1} parent=1 // pred_fallthru
      _
    // Predicated region
    $region26: #{tpu_custom_call.1} parent=1 // pred_check
      _
    $region27: #{tpu_custom_call.1} parent=1 // pred_check_branch
      %48 = sbr.rel (0) target = $region29
    $region28: #{tpu_custom_call.1} parent=1 // pred_region
      %49 = dma.done [#allocation6], 4096
    $region29: #{tpu_custom_call.1} parent=1 // pred_fallthru
      _
    %v51 = vld [vmem:[#allocation3] sm:$0xff]
    %v52 = vld [vmem:[#allocation3 + $0x8] sm:$0xff]
    %v53 = vld [vmem:[#allocation3 + $0x10] sm:$0xff]
    %v54 = vld [vmem:[#allocation3 + $0x18] sm:$0xff]
    %v55 = vld [vmem:[#allocation3 + $0x20] sm:$0xff]
    %v56 = vld [vmem:[#allocation3 + $0x28] sm:$0xff]
    %v57 = vld [vmem:[#allocation3 + $0x30] sm:$0xff]
    %v58 = vld [vmem:[#allocation3 + $0x38] sm:$0xff]
    %v59 = vld [vmem:[#allocation5] sm:$0xf]
    %v60 = vld [vmem:[#allocation5 + $0x4] sm:$0xf]
    %v61 = vld [vmem:[#allocation5 + $0x8] sm:$0xf]
    %v62 = vld [vmem:[#allocation5 + $0xc] sm:$0xf]
    %v63 = vld [vmem:[#allocation5 + $0x10] sm:$0xf]
    %v64 = vld [vmem:[#allocation5 + $0x14] sm:$0xf]
    %v65 = vld [vmem:[#allocation5 + $0x18] sm:$0xf]
    %v66 = vld [vmem:[#allocation5 + $0x1c] sm:$0xf]
    %v67 = vld [vmem:[#allocation5 + $0x20] sm:$0xf]
    %v68 = vld [vmem:[#allocation5 + $0x24] sm:$0xf]
    %v69 = vld [vmem:[#allocation5 + $0x28] sm:$0xf]
    %v70 = vld [vmem:[#allocation5 + $0x2c] sm:$0xf]
    %v71 = vld [vmem:[#allocation5 + $0x30] sm:$0xf]
    %v72 = vld [vmem:[#allocation5 + $0x34] sm:$0xf]
    %v73 = vld [vmem:[#allocation5 + $0x38] sm:$0xf]
    %v74 = vld [vmem:[#allocation5 + $0x3c] sm:$0xf]
    %v75 = vld [vmem:[#allocation5 + $0x40] sm:$0xf]
    %v76 = vld [vmem:[#allocation5 + $0x44] sm:$0xf]
    %v77 = vld [vmem:[#allocation5 + $0x48] sm:$0xf]
    %v78 = vld [vmem:[#allocation5 + $0x4c] sm:$0xf]
    %v79 = vld [vmem:[#allocation5 + $0x50] sm:$0xf]
    %v80 = vld [vmem:[#allocation5 + $0x54] sm:$0xf]
    %v81 = vld [vmem:[#allocation5 + $0x58] sm:$0xf]
    %v82 = vld [vmem:[#allocation5 + $0x5c] sm:$0xf]
    %v83 = vld [vmem:[#allocation5 + $0x60] sm:$0xf]
    %v84 = vld [vmem:[#allocation5 + $0x64] sm:$0xf]
    %v85 = vld [vmem:[#allocation5 + $0x68] sm:$0xf]
    %v86 = vld [vmem:[#allocation5 + $0x6c] sm:$0xf]
    %v87 = vld [vmem:[#allocation5 + $0x70] sm:$0xf]
    %v88 = vld [vmem:[#allocation5 + $0x74] sm:$0xf]
    %v89 = vld [vmem:[#allocation5 + $0x78] sm:$0xf]
    %v90 = vld [vmem:[#allocation5 + $0x7c] sm:$0xf]
    %v91 = vld [vmem:[#allocation5 + $0x80] sm:$0xf]
    %v92 = vld [vmem:[#allocation5 + $0x84] sm:$0xf]
    %v93 = vld [vmem:[#allocation5 + $0x88] sm:$0xf]
    %v94 = vld [vmem:[#allocation5 + $0x8c] sm:$0xf]
    %v95 = vld [vmem:[#allocation5 + $0x90] sm:$0xf]
    %v96 = vld [vmem:[#allocation5 + $0x94] sm:$0xf]
    %v97 = vld [vmem:[#allocation5 + $0x98] sm:$0xf]
    %v98 = vld [vmem:[#allocation5 + $0x9c] sm:$0xf]
    %v99 = vld [vmem:[#allocation5 + $0xa0] sm:$0xf]
    %v100 = vld [vmem:[#allocation5 + $0xa4] sm:$0xf]
    %v101 = vld [vmem:[#allocation5 + $0xa8] sm:$0xf]
    %v102 = vld [vmem:[#allocation5 + $0xac] sm:$0xf]
    %v103 = vld [vmem:[#allocation5 + $0xb0] sm:$0xf]
    %v104 = vld [vmem:[#allocation5 + $0xb4] sm:$0xf]
    %v105 = vld [vmem:[#allocation5 + $0xb8] sm:$0xf]
    %v106 = vld [vmem:[#allocation5 + $0xbc] sm:$0xf]
    %v107 = vld [vmem:[#allocation5 + $0xc0] sm:$0xf]
    %v108 = vld [vmem:[#allocation5 + $0xc4] sm:$0xf]
    %v109 = vld [vmem:[#allocation5 + $0xc8] sm:$0xf]
    %v110 = vld [vmem:[#allocation5 + $0xcc] sm:$0xf]
    %v111 = vld [vmem:[#allocation5 + $0xd0] sm:$0xf]
    %v112 = vld [vmem:[#allocation5 + $0xd4] sm:$0xf]
    %v113 = vld [vmem:[#allocation5 + $0xd8] sm:$0xf]
    %v114 = vld [vmem:[#allocation5 + $0xdc] sm:$0xf]
    %v115 = vld [vmem:[#allocation5 + $0xe0] sm:$0xf]
    %v116 = vld [vmem:[#allocation5 + $0xe4] sm:$0xf]
    %v117 = vld [vmem:[#allocation5 + $0xe8] sm:$0xf]
    %v118 = vld [vmem:[#allocation5 + $0xec] sm:$0xf]
    %v119 = vld [vmem:[#allocation5 + $0xf0] sm:$0xf]
    %v120 = vld [vmem:[#allocation5 + $0xf4] sm:$0xf]
    %v121 = vld [vmem:[#allocation5 + $0xf8] sm:$0xf]
    %v122 = vld [vmem:[#allocation5 + $0xfc] sm:$0xf]
    %v123 = vld [vmem:[%s2] sm:$0x1]
    %v125 = vlaneseq
    %v126 = vshrl.u32 %v125, 7
    %v127 = vsub.s32 0, %v126
    %v128 = vrot.slane %v123, %v127
    %v138 = vunpack.c.l.b16 %v51
    %v139 = vunpack.c.h.b16 %v51
    %v140 = vunpack.c.l.b16 %v52
    %v141 = vunpack.c.h.b16 %v52
    %v142 = vunpack.c.l.b16 %v53
    %v143 = vunpack.c.h.b16 %v53
    %v144 = vunpack.c.l.b16 %v54
    %v145 = vunpack.c.h.b16 %v54
    %v146 = vunpack.c.l.b16 %v55
    %v147 = vunpack.c.h.b16 %v55
    %v148 = vunpack.c.l.b16 %v56
    %v149 = vunpack.c.h.b16 %v56
    %v150 = vunpack.c.l.b16 %v57
    %v151 = vunpack.c.h.b16 %v57
    %v152 = vunpack.c.l.b16 %v58
    %v153 = vunpack.c.h.b16 %v58
    %v154 = vpack.c.b16 %v142, %v138
    %v155 = vpack.c.b16 %v143, %v139
    %v156 = vpack.c.b16 %v144, %v140
    %v157 = vpack.c.b16 %v145, %v141
    %v158 = vpack.c.b16 %v150, %v146
    %v159 = vpack.c.b16 %v151, %v147
    %v160 = vpack.c.b16 %v152, %v148
    %v161 = vpack.c.b16 %v153, %v149
    %v234 = vunpack.c.l.b16 %v59
    %v235 = vunpack.c.l.b16 %v60
    %v236 = vunpack.c.l.b16 %v61
    %v237 = vunpack.c.l.b16 %v62
    %v238 = vunpack.c.l.b16 %v63
    %v239 = vunpack.c.l.b16 %v64
    %v240 = vunpack.c.l.b16 %v65
    %v241 = vunpack.c.l.b16 %v66
    %v242 = vunpack.c.l.b16 %v67
    %v243 = vunpack.c.l.b16 %v68
    %v244 = vunpack.c.l.b16 %v69
    %v245 = vunpack.c.l.b16 %v70
    %v246 = vunpack.c.l.b16 %v71
    %v247 = vunpack.c.l.b16 %v72
    %v248 = vunpack.c.l.b16 %v73
    %v249 = vunpack.c.l.b16 %v74
    %v250 = vunpack.c.l.b16 %v75
    %v251 = vunpack.c.l.b16 %v76
    %v252 = vunpack.c.l.b16 %v77
    %v253 = vunpack.c.l.b16 %v78
    %v254 = vunpack.c.l.b16 %v79
    %v255 = vunpack.c.l.b16 %v80
    %v256 = vunpack.c.l.b16 %v81
    %v257 = vunpack.c.l.b16 %v82
    %v258 = vunpack.c.l.b16 %v83
    %v259 = vunpack.c.l.b16 %v84
    %v260 = vunpack.c.l.b16 %v85
    %v261 = vunpack.c.l.b16 %v86
    %v262 = vunpack.c.l.b16 %v87
    %v263 = vunpack.c.l.b16 %v88
    %v264 = vunpack.c.l.b16 %v89
    %v265 = vunpack.c.l.b16 %v90
    %v266 = vunpack.c.l.b16 %v91
    %v267 = vunpack.c.l.b16 %v92
    %v268 = vunpack.c.l.b16 %v93
    %v269 = vunpack.c.l.b16 %v94
    %v270 = vunpack.c.l.b16 %v95
    %v271 = vunpack.c.l.b16 %v96
    %v272 = vunpack.c.l.b16 %v97
    %v273 = vunpack.c.l.b16 %v98
    %v274 = vunpack.c.l.b16 %v99
    %v275 = vunpack.c.l.b16 %v100
    %v276 = vunpack.c.l.b16 %v101
    %v277 = vunpack.c.l.b16 %v102
    %v278 = vunpack.c.l.b16 %v103
    %v279 = vunpack.c.l.b16 %v104
    %v280 = vunpack.c.l.b16 %v105
    %v281 = vunpack.c.l.b16 %v106
    %v282 = vunpack.c.l.b16 %v107
    %v283 = vunpack.c.l.b16 %v108
    %v284 = vunpack.c.l.b16 %v109
    %v285 = vunpack.c.l.b16 %v110
    %v286 = vunpack.c.l.b16 %v111
    %v287 = vunpack.c.l.b16 %v112
    %v288 = vunpack.c.l.b16 %v113
    %v289 = vunpack.c.l.b16 %v114
    %v290 = vunpack.c.l.b16 %v115
    %v291 = vunpack.c.l.b16 %v116
    %v292 = vunpack.c.l.b16 %v117
    %v293 = vunpack.c.l.b16 %v118
    %v294 = vunpack.c.l.b16 %v119
    %v295 = vunpack.c.l.b16 %v120
    %v296 = vunpack.c.l.b16 %v121
    %v297 = vunpack.c.l.b16 %v122
    %v298 = vpack.c.b16 %v235, %v234
    %v299 = vpack.c.b16 %v237, %v236
    %v300 = vpack.c.b16 %v239, %v238
    %v301 = vpack.c.b16 %v241, %v240
    %v302 = vpack.c.b16 %v243, %v242
    %v303 = vpack.c.b16 %v245, %v244
    %v304 = vpack.c.b16 %v247, %v246
    %v305 = vpack.c.b16 %v249, %v248
    %v306 = vpack.c.b16 %v251, %v250
    %v307 = vpack.c.b16 %v253, %v252
    %v308 = vpack.c.b16 %v255, %v254
    %v309 = vpack.c.b16 %v257, %v256
    %v310 = vpack.c.b16 %v259, %v258
    %v311 = vpack.c.b16 %v261, %v260
    %v312 = vpack.c.b16 %v263, %v262
    %v313 = vpack.c.b16 %v265, %v264
    %v314 = vpack.c.b16 %v267, %v266
    %v315 = vpack.c.b16 %v269, %v268
    %v316 = vpack.c.b16 %v271, %v270
    %v317 = vpack.c.b16 %v273, %v272
    %v318 = vpack.c.b16 %v275, %v274
    %v319 = vpack.c.b16 %v277, %v276
    %v320 = vpack.c.b16 %v279, %v278
    %v321 = vpack.c.b16 %v281, %v280
    %v322 = vpack.c.b16 %v283, %v282
    %v323 = vpack.c.b16 %v285, %v284
    %v324 = vpack.c.b16 %v287, %v286
    %v325 = vpack.c.b16 %v289, %v288
    %v326 = vpack.c.b16 %v291, %v290
    %v327 = vpack.c.b16 %v293, %v292
    %v328 = vpack.c.b16 %v295, %v294
    %v329 = vpack.c.b16 %v297, %v296
    %362 = vmatprep.subr.bf16.mxu0 0
    %363 = vmatpush1.bf16.msra.mxu0 %v298
    %364 = vmatprep.subr.bf16.mxu0 0
    %365 = vmatpush1.bf16.msra.mxu0 %v299
    %366 = vmatprep.subr.bf16.mxu0 0
    %367 = vmatpush1.bf16.msra.mxu0 %v300
    %368 = vmatprep.subr.bf16.mxu0 0
    %369 = vmatpush1.bf16.msra.mxu0 %v301
    %370 = vmatprep.subr.bf16.mxu0 0
    %371 = vmatpush1.bf16.msra.mxu0 %v302
    %372 = vmatprep.subr.bf16.mxu0 0
    %373 = vmatpush1.bf16.msra.mxu0 %v303
    %374 = vmatprep.subr.bf16.mxu0 0
    %375 = vmatpush1.bf16.msra.mxu0 %v304
    %376 = vmatprep.subr.bf16.mxu0 0
    %377 = vmatpush1.bf16.msra.mxu0 %v305
    %378 = vmatprep.subr.bf16.mxu0 0
    %379 = vmatpush1.bf16.msra.mxu0 %v306
    %380 = vmatprep.subr.bf16.mxu0 0
    %381 = vmatpush1.bf16.msra.mxu0 %v307
    %382 = vmatprep.subr.bf16.mxu0 0
    %383 = vmatpush1.bf16.msra.mxu0 %v308
    %384 = vmatprep.subr.bf16.mxu0 0
    %385 = vmatpush1.bf16.msra.mxu0 %v309
    %386 = vmatprep.subr.bf16.mxu0 0
    %387 = vmatpush1.bf16.msra.mxu0 %v310
    %388 = vmatprep.subr.bf16.mxu0 0
    %389 = vmatpush1.bf16.msra.mxu0 %v311
    %390 = vmatprep.subr.bf16.mxu0 0
    %391 = vmatpush1.bf16.msra.mxu0 %v312
    %392 = vmatprep.subr.bf16.mxu0 0
    %393 = vmatpush1.bf16.msra.mxu0 %v313
    %394 = vmatprep.mubr.bf16.mxu0 %v155
    %395 = vmatmul.mubr.bf16.gmra.mrb[0].mxu0 %v154
    %v396 = vpop.f32.mrb[0].mxu0
    %v397 = vadd.f32 %v128, %v396
    %v398 = vpop.f32.mrb[0].mxu0
    %v399 = vpop.f32.mrb[0].mxu0
    %v400 = vadd.f32 %v128, %v399
    %v401 = vpop.f32.mrb[0].mxu0
    %402 = vmatprep.mubr.bf16.mxu0 %v159
    %403 = vmatmul.mubr.bf16.gmra.mrb[0].mxu0 %v158
    %v404 = vpop.f32.mrb[0].mxu0
    %v405 = vadd.f32 %v128, %v404
    %v406 = vpop.f32.mrb[0].mxu0
    %v407 = vpop.f32.mrb[0].mxu0
    %v408 = vadd.f32 %v128, %v407
    %v409 = vpop.f32.mrb[0].mxu0
    %410 = vdwg.mxu0
    %411 = vmatprep.subr.bf16.mxu0 0
    %412 = vmatpush1.bf16.msra.mxu0 %v314
    %413 = vmatprep.subr.bf16.mxu0 0
    %414 = vmatpush1.bf16.msra.mxu0 %v315
    %415 = vmatprep.subr.bf16.mxu0 0
    %416 = vmatpush1.bf16.msra.mxu0 %v316
    %417 = vmatprep.subr.bf16.mxu0 0
    %418 = vmatpush1.bf16.msra.mxu0 %v317
    %419 = vmatprep.subr.bf16.mxu0 0
    %420 = vmatpush1.bf16.msra.mxu0 %v318
    %421 = vmatprep.subr.bf16.mxu0 0
    %422 = vmatpush1.bf16.msra.mxu0 %v319
    %423 = vmatprep.subr.bf16.mxu0 0
    %424 = vmatpush1.bf16.msra.mxu0 %v320
    %425 = vmatprep.subr.bf16.mxu0 0
    %426 = vmatpush1.bf16.msra.mxu0 %v321
    %427 = vmatprep.subr.bf16.mxu0 0
    %428 = vmatpush1.bf16.msra.mxu0 %v322
    %429 = vmatprep.subr.bf16.mxu0 0
    %430 = vmatpush1.bf16.msra.mxu0 %v323
    %431 = vmatprep.subr.bf16.mxu0 0
    %432 = vmatpush1.bf16.msra.mxu0 %v324
    %433 = vmatprep.subr.bf16.mxu0 0
    %434 = vmatpush1.bf16.msra.mxu0 %v325
    %435 = vmatprep.subr.bf16.mxu0 0
    %436 = vmatpush1.bf16.msra.mxu0 %v326
    %437 = vmatprep.subr.bf16.mxu0 0
    %438 = vmatpush1.bf16.msra.mxu0 %v327
    %439 = vmatprep.subr.bf16.mxu0 0
    %440 = vmatpush1.bf16.msra.mxu0 %v328
    %441 = vmatprep.subr.bf16.mxu0 0
    %442 = vmatpush1.bf16.msra.mxu0 %v329
    %443 = vmatprep.mubr.bf16.mxu0 %v157
    %444 = vmatmul.mubr.bf16.gmra.mrb[0].mxu0 %v156
    %v445 = vpop.f32.mrb[0].mxu0
    %v446 = vadd.f32 %v397, %v445
    %v447 = vpop.f32.mrb[0].mxu0
    %v448 = vpop.f32.mrb[0].mxu0
    %v449 = vadd.f32 %v400, %v448
    %v450 = vpop.f32.mrb[0].mxu0
    %451 = vmatprep.mubr.bf16.mxu0 %v161
    %452 = vmatmul.mubr.bf16.gmra.mrb[0].mxu0 %v160
    %v453 = vpop.f32.mrb[0].mxu0
    %v454 = vadd.f32 %v405, %v453
    %v455 = vpop.f32.mrb[0].mxu0
    %v456 = vpop.f32.mrb[0].mxu0
    %v457 = vadd.f32 %v408, %v456
    %v458 = vpop.f32.mrb[0].mxu0
    %459 = vdwg.mxu0
    %v460 = vtanh.pop %v446
    %v461 = vtanh.pop %v449
    %v462 = vtanh.pop %v454
    %v463 = vtanh.pop %v457
    %v464 = vld [vmem:[%s3] sm:$0x1]
    %v466 = vlaneseq
    %v467 = vshrl.u32 %v466, 7
    %v468 = vsub.s32 0, %v467
    %v469 = vrot.slane %v464, %v468
    %v471 = vmul.f32 %v460, %v469
    %v472 = vmul.f32 %v461, %v469
    %v473 = vmul.f32 %v462, %v469
    %v474 = vmul.f32 %v463, %v469
    %475 = vadd.xlane.f32.xlu0 %v471
    %v476 = vpop.xlane.xlu0 %475
    %477 = vadd.xlane.f32.xlu0 %v472
    %v478 = vpop.xlane.xlu0 %477
    %479 = vadd.xlane.f32.xlu0 %v473
    %v480 = vpop.xlane.xlu0 %479
    %481 = vadd.xlane.f32.xlu0 %v474
    %v482 = vpop.xlane.xlu0 %481
    %v483 = vld [vmem:[#allocation2] sm:$0x1]
    %v485 = vlaneseq
    %v486 = vshrl.u32 %v485, 7
    %v487 = vsub.s32 0, %v486
    %v488 = vrot.slane %v483, %v487
    %v490 = vadd.f32 %v476, %v488
    %v491 = vadd.f32 %v478, %v488
    %v492 = vadd.f32 %v480, %v488
    %v493 = vadd.f32 %v482, %v488
    %vm494 = vcmask 7168
    %495 = vst.msk [vmem:[%s5] sm:$0xff] %vm494, %v490
    %496 = vst.msk [vmem:[%s5 + $0x8] sm:$0xff] %vm494, %v491
    %497 = vst.msk [vmem:[%s5 + $0x10] sm:$0xff] %vm494, %v492
    %498 = vst.msk [vmem:[%s5 + $0x18] sm:$0xff] %vm494, %v493
    // Predicated region
    $region30: #{tpu_custom_call.1} parent=1 // pred_check
      _
    $region31: #{tpu_custom_call.1} parent=1 // pred_check_branch
      %500 = sbr.rel (0) target = $region33
    $region32: #{tpu_custom_call.1} parent=1 // pred_region
      _
    $region33: #{tpu_custom_call.1} parent=1 // pred_fallthru
      _
    // Predicated region
    $region34: #{tpu_custom_call.1} parent=1 // pred_check
      _
    $region35: #{tpu_custom_call.1} parent=1 // pred_check_branch
      %502 = sbr.rel (0) target = $region37
    $region36: #{tpu_custom_call.1} parent=1 // pred_region
      _
    $region37: #{tpu_custom_call.1} parent=1 // pred_fallthru
      _
    %503 = vsyncpa [#allocation4], 1
    %504 = vsyncpa [#allocation6], 1

</llo_original>
